<compile_context>
chip_gen: v7x
topology: tpu7x:2x2x1
jax: 0.10.0
libtpu: 0.0.40
codegen_flags: <defaults>
</compile_context>

<pallas_src>
import functools

import jax
import jax.numpy as jnp
from jax.experimental import pallas as pl
from jax.experimental import pallas as _pl_unused  # keep namespace tidy
from jax.experimental.pallas import tpu as pltpu


def _round_up(v, m):
    return (v + m - 1) // m * m


def lstm_step_kernel(xh_ref, c_ref, w_ref, b_ref, wp_ref, bp_ref,
                     out_ref, h_out_ref, c_out_ref, *, hidden_pad):
    Hp = hidden_pad

    xh = xh_ref[...]                      # (Bp, K_pad) = [x | h | 0-pad]
    c = c_ref[...]                        # (1, Hp), zero beyond the real H lanes

    # Single fused MXU matmul producing all 4 gate pre-activations: (Bp, 4*Hp)
    gates = jnp.dot(xh, w_ref[...], preferred_element_type=jnp.float32) + b_ref[...]

    # Each gate occupies a full 128-lane-aligned block -> no sub-lane slicing.
    ft = jax.nn.sigmoid(gates[:, 0 * Hp:1 * Hp])   # forget gate
    it = jax.nn.sigmoid(gates[:, 1 * Hp:2 * Hp])   # input gate
    ct = jnp.tanh(gates[:, 2 * Hp:3 * Hp])         # candidate cell
    ot = jax.nn.sigmoid(gates[:, 3 * Hp:4 * Hp])   # output gate

    # Padded lanes: c==0, ct==tanh(0)==0 -> c_new pad lanes stay exactly 0.
    c_new = ft * c + it * ct                       # (Bp, Hp)
    h_new = ot * jnp.tanh(c_new)                   # (Bp, Hp)

    # predict + softmax(dim=1).  Pad lanes of bp carry -1e30, so exp() drives them
    # to exactly 0 with no explicit in-kernel masking.
    logits = (jnp.dot(h_new, wp_ref[...], preferred_element_type=jnp.float32)
              + bp_ref[...])                       # (Bp, O_pad)

    m = jnp.max(logits, axis=1, keepdims=True)
    e = jnp.exp(logits - m)
    denom = jnp.sum(e, axis=1, keepdims=True)
    probs = e * pl.reciprocal(denom, approx=True)  # EUP vrcp (free issue slot)

    out_ref[...] = probs
    h_out_ref[...] = h_new
    c_out_ref[...] = c_new


def lstm_forward(x, h, c, wx, wh, b, wp, bp):
    """One LSTM step.

    x: (B, I)   h, c: (1, H)   wx: (I, 4H)   wh: (H, 4H)   b: (1, 4H)
    wp: (H, O)  bp: (1, O)
    Returns (softmax probs (B, O), new hidden (B, H), new cell (B, H)).
    """
    B, I = x.shape
    H = h.shape[1]
    O = wp.shape[1]

    B_pad = _round_up(B, 8)          # full sublanes
    H_pad = _round_up(H, 128)        # full lanes per gate block
    O_pad = _round_up(O, 128)
    K_pad = _round_up(I + H, 128)
    f32 = jnp.float32

    # --- wrapper-side layout plumbing: fused operand + lane/sublane-dense padding ---
    xh = jnp.zeros((B_pad, K_pad), f32)
    xh = xh.at[:B, :I].set(x.astype(f32))
    xh = xh.at[:B, I:I + H].set(jnp.broadcast_to(h.astype(f32), (B, H)))

    c_pad = jnp.zeros((1, H_pad), f32).at[:, :H].set(c.astype(f32))

    w_fused = jnp.zeros((K_pad, 4 * H_pad), f32)   # rows: [Wx ; Wh ; 0], cols: gate-blocked
    b_fused = jnp.zeros((1, 4 * H_pad), f32)
    for g in range(4):  # gate order [f, i, c~, o]
        w_fused = w_fused.at[:I, g * H_pad:g * H_pad + H].set(wx[:, g * H:(g + 1) * H])
        w_fused = w_fused.at[I:I + H, g * H_pad:g * H_pad + H].set(wh[:, g * H:(g + 1) * H])
        b_fused = b_fused.at[:, g * H_pad:g * H_pad + H].set(b[:, g * H:(g + 1) * H])

    wp_pad = jnp.zeros((H_pad, O_pad), f32).at[:H, :O].set(wp)
    # Softmax lane mask folded into the bias: pad lanes -> -1e30 (exp underflows to 0).
    bp_pad = jnp.full((1, O_pad), -1e30, f32).at[:, :O].set(bp)

    def full_spec(shape):
        return pl.BlockSpec(shape, lambda: tuple(0 for _ in shape))

    kernel = functools.partial(lstm_step_kernel, hidden_pad=H_pad)

    probs_p, h_p, c_p = pl.pallas_call(
        kernel,
        grid=(),
        in_specs=[
            full_spec((B_pad, K_pad)),       # [x | h]
            full_spec((1, H_pad)),           # cell state (broadcasts over batch)
            full_spec((K_pad, 4 * H_pad)),   # fused gate weights [Wx; Wh]
            full_spec((1, 4 * H_pad)),       # fused gate biases
            full_spec((H_pad, O_pad)),       # predict weight
            full_spec((1, O_pad)),           # predict bias (with pad-lane mask)
        ],
        out_specs=[
            full_spec((B_pad, O_pad)),
            full_spec((B_pad, H_pad)),
            full_spec((B_pad, H_pad)),
        ],
        out_shape=[
            jax.ShapeDtypeStruct((B_pad, O_pad), f32),   # softmax output (dense)
            jax.ShapeDtypeStruct((B_pad, H_pad), f32),   # new hidden state (dense)
            jax.ShapeDtypeStruct((B_pad, H_pad), f32),   # new cell state (dense)
        ],
        compiler_params=pltpu.CompilerParams(dimension_semantics=()),
    )(xh, c_pad, w_fused, b_fused, wp_pad, bp_pad)

    # Strip padding back to the module's real shapes.
    return probs_p[:B, :O], h_p[:B, :H], c_p[:B, :H]


def init_params(key, input_size, hidden_size, output_size):
    """Deterministic synthetic params, mimicking torch.nn.Linear init ranges.

    Gate order: [f, i, c~, o]. Each gate k has:
      W_x[k]: (input_size, hidden), W_h[k]: (hidden, hidden),
      bias = b_lin_x[k] + b_lin_h[k] + b_extra[k] (b_extra is zeros in the module).
    """
    keys = jax.random.split(key, 20)
    ki = iter(keys)

    def lin(k, fan_in, shape):
        bound = 1.0 / jnp.sqrt(fan_in)
        return jax.random.uniform(k, shape, jnp.float32, -bound, bound)

    wx_list, wh_list, b_list = [], [], []
    for _ in range(4):  # f, i, c, o
        w_x = lin(next(ki), input_size, (input_size, hidden_size))
        b_x = lin(next(ki), input_size, (hidden_size,))
        w_h = lin(next(ki), hidden_size, (hidden_size, hidden_size))
        b_h = lin(next(ki), hidden_size, (hidden_size,))
        b_extra = jnp.zeros((hidden_size,), jnp.float32)  # b_f / b_i / b_c / b_o
        wx_list.append(w_x)
        wh_list.append(w_h)
        b_list.append(b_x + b_h + b_extra)

    wx = jnp.concatenate(wx_list, axis=1)                 # (I, 4H)
    wh = jnp.concatenate(wh_list, axis=1)                 # (H, 4H)
    b = jnp.concatenate(b_list, axis=0)[None, :]          # (1, 4H)

    wp = lin(next(ki), hidden_size, (hidden_size, output_size))  # (H, O)
    bp = lin(next(ki), hidden_size, (output_size,))[None, :]     # (1, O)
    return wx, wh, b, wp, bp


if __name__ == "__main__":
    input_size, hidden_size, output_size = 16, 32, 8
    batch = 2

    key = jax.random.PRNGKey(0)
    k_x, k_p = jax.random.split(key)

    x = jax.random.normal(k_x, (batch, input_size), jnp.float32)
    h0 = jnp.zeros((1, hidden_size), jnp.float32)   # self.ht
    c0 = jnp.zeros((1, hidden_size), jnp.float32)   # self.cell

    wx, wh, b, wp, bp = init_params(k_p, input_size, hidden_size, output_size)

    probs, h1, c1 = lstm_forward(x, h0, c0, wx, wh, b, wp, bp)
    jax.block_until_ready((probs, h1, c1))

    # Pure-JAX reference check
    gates = x @ wx + h0 @ wh + b
    H = hidden_size
    ft = jax.nn.sigmoid(gates[:, 0:H])
    it = jax.nn.sigmoid(gates[:, H:2 * H])
    ct = jnp.tanh(gates[:, 2 * H:3 * H])
    ot = jax.nn.sigmoid(gates[:, 3 * H:4 * H])
    c_ref = ft * c0 + it * ct
    h_ref = ot * jnp.tanh(c_ref)
    probs_ref = jax.nn.softmax(h_ref @ wp + bp, axis=1)

    # probs tolerance loosened because of pl.reciprocal(approx=True) in the softmax.
    assert jnp.allclose(probs, probs_ref, atol=2e-3), "softmax output mismatch"
    assert jnp.allclose(h1, h_ref, atol=1e-5), "hidden state mismatch"
    assert jnp.allclose(c1, c_ref, atol=1e-5), "cell state mismatch"

    print("KERNEL_OK")
</pallas_src>

<mosaic_0001>
module attributes {stable_mosaic.version = 11 : i64} {
  func.func @lstm_step_kernel(%arg0: memref<8x128xf32, #tpu.memory_space<vmem>>, %arg1: memref<1x128xf32, #tpu.memory_space<vmem>>, %arg2: memref<128x512xf32, #tpu.memory_space<vmem>>, %arg3: memref<1x512xf32, #tpu.memory_space<vmem>>, %arg4: memref<128x128xf32, #tpu.memory_space<vmem>>, %arg5: memref<1x128xf32, #tpu.memory_space<vmem>>, %arg6: memref<8x128xf32, #tpu.memory_space<vmem>>, %arg7: memref<8x128xf32, #tpu.memory_space<vmem>>, %arg8: memref<8x128xf32, #tpu.memory_space<vmem>>) attributes {dimension_semantics = [], scalar_prefetch = 0 : i64, scratch_operands = 0 : i64, tpu.core_type = #tpu.core_type<tc>} {
    %c0 = arith.constant 0 : index
    %c0_0 = arith.constant 0 : index
    %0 = vector.load %arg0[%c0, %c0_0] : memref<8x128xf32, #tpu.memory_space<vmem>>, vector<8x128xf32>
    %c0_1 = arith.constant 0 : index
    %c0_2 = arith.constant 0 : index
    %1 = vector.load %arg1[%c0_1, %c0_2] : memref<1x128xf32, #tpu.memory_space<vmem>>, vector<1x128xf32>
    %c0_3 = arith.constant 0 : index
    %c0_4 = arith.constant 0 : index
    %2 = vector.load %arg2[%c0_3, %c0_4] : memref<128x512xf32, #tpu.memory_space<vmem>>, vector<128x512xf32>
    %cst = arith.constant dense<0.000000e+00> : vector<8x512xf32>
    %3 = tpu.matmul %0, %2, %cst {dimension_numbers = #tpu.dot_dimension_numbers<[1], [0], [0], [1], [0, 0, 1, 1], [], []>} : vector<8x128xf32>, vector<128x512xf32>, vector<8x512xf32> -> vector<8x512xf32>
    %c0_5 = arith.constant 0 : index
    %c0_6 = arith.constant 0 : index
    %4 = vector.load %arg3[%c0_5, %c0_6] : memref<1x512xf32, #tpu.memory_space<vmem>>, vector<1x512xf32>
    %5 = vector.broadcast %4 : vector<1x512xf32> to vector<8x512xf32>
    %6 = arith.addf %3, %5 : vector<8x512xf32>
    %7 = vector.extract_strided_slice %6 {offsets = [0, 0], sizes = [8, 128], strides = [1, 1]} : vector<8x512xf32> to vector<8x128xf32>
    %8 = arith.negf %7 : vector<8x128xf32>
    %9 = math.exp %8 : vector<8x128xf32>
    %cst_7 = arith.constant 1.000000e+00 : f32
    %10 = vector.broadcast %cst_7 : f32 to vector<8x128xf32>
    %11 = arith.addf %10, %9 : vector<8x128xf32>
    %12 = arith.divf %10, %11 : vector<8x128xf32>
    %13 = vector.extract_strided_slice %6 {offsets = [0, 128], sizes = [8, 128], strides = [1, 1]} : vector<8x512xf32> to vector<8x128xf32>
    %14 = arith.negf %13 : vector<8x128xf32>
    %15 = math.exp %14 : vector<8x128xf32>
    %cst_8 = arith.constant 1.000000e+00 : f32
    %16 = vector.broadcast %cst_8 : f32 to vector<8x128xf32>
    %17 = arith.addf %16, %15 : vector<8x128xf32>
    %18 = arith.divf %16, %17 : vector<8x128xf32>
    %19 = vector.extract_strided_slice %6 {offsets = [0, 256], sizes = [8, 128], strides = [1, 1]} : vector<8x512xf32> to vector<8x128xf32>
    %20 = math.tanh %19 : vector<8x128xf32>
    %21 = vector.extract_strided_slice %6 {offsets = [0, 384], sizes = [8, 128], strides = [1, 1]} : vector<8x512xf32> to vector<8x128xf32>
    %22 = arith.negf %21 : vector<8x128xf32>
    %23 = math.exp %22 : vector<8x128xf32>
    %cst_9 = arith.constant 1.000000e+00 : f32
    %24 = vector.broadcast %cst_9 : f32 to vector<8x128xf32>
    %25 = arith.addf %24, %23 : vector<8x128xf32>
    %26 = arith.divf %24, %25 : vector<8x128xf32>
    %27 = vector.broadcast %1 : vector<1x128xf32> to vector<8x128xf32>
    %28 = arith.mulf %12, %27 : vector<8x128xf32>
    %29 = arith.mulf %18, %20 : vector<8x128xf32>
    %30 = arith.addf %28, %29 : vector<8x128xf32>
    %31 = math.tanh %30 : vector<8x128xf32>
    %32 = arith.mulf %26, %31 : vector<8x128xf32>
    %c0_10 = arith.constant 0 : index
    %c0_11 = arith.constant 0 : index
    %33 = vector.load %arg4[%c0_10, %c0_11] : memref<128x128xf32, #tpu.memory_space<vmem>>, vector<128x128xf32>
    %cst_12 = arith.constant dense<0.000000e+00> : vector<8x128xf32>
    %34 = tpu.matmul %32, %33, %cst_12 {dimension_numbers = #tpu.dot_dimension_numbers<[1], [0], [0], [1], [0, 0, 1, 1], [], []>} : vector<8x128xf32>, vector<128x128xf32>, vector<8x128xf32> -> vector<8x128xf32>
    %c0_13 = arith.constant 0 : index
    %c0_14 = arith.constant 0 : index
    %35 = vector.load %arg5[%c0_13, %c0_14] : memref<1x128xf32, #tpu.memory_space<vmem>>, vector<1x128xf32>
    %36 = vector.broadcast %35 : vector<1x128xf32> to vector<8x128xf32>
    %37 = arith.addf %34, %36 : vector<8x128xf32>
    %cst_15 = arith.constant dense<0xFF800000> : vector<8xf32>
    %38 = vector.multi_reduction <maximumf>, %37, %cst_15 [1] : vector<8x128xf32> to vector<8xf32>
    %39 = vector.shape_cast %38 : vector<8xf32> to vector<8x1xf32>
    %40 = vector.broadcast %39 : vector<8x1xf32> to vector<8x128xf32>
    %41 = arith.subf %37, %40 : vector<8x128xf32>
    %42 = math.exp %41 : vector<8x128xf32>
    %cst_16 = arith.constant dense<0.000000e+00> : vector<8xf32>
    %43 = vector.multi_reduction <add>, %42, %cst_16 [1] : vector<8x128xf32> to vector<8xf32>
    %44 = vector.shape_cast %43 : vector<8xf32> to vector<8x1xf32>
    %45 = tpu.reciprocal %44 {approx = true} : vector<8x1xf32> -> vector<8x1xf32>
    %46 = vector.broadcast %45 : vector<8x1xf32> to vector<8x128xf32>
    %47 = arith.mulf %42, %46 : vector<8x128xf32>
    %c0_17 = arith.constant 0 : index
    %c0_18 = arith.constant 0 : index
    %48 = vector.load %arg6[%c0_17, %c0_18] : memref<8x128xf32, #tpu.memory_space<vmem>>, vector<8x128xf32>
    tpu.vector_store %arg6[%c0_17, %c0_18], %47 {strides = array<i32>} : memref<8x128xf32, #tpu.memory_space<vmem>>, vector<8x128xf32>,
    %c0_19 = arith.constant 0 : index
    %c0_20 = arith.constant 0 : index
    %49 = vector.load %arg7[%c0_19, %c0_20] : memref<8x128xf32, #tpu.memory_space<vmem>>, vector<8x128xf32>
    tpu.vector_store %arg7[%c0_19, %c0_20], %32 {strides = array<i32>} : memref<8x128xf32, #tpu.memory_space<vmem>>, vector<8x128xf32>,
    %c0_21 = arith.constant 0 : index
    %c0_22 = arith.constant 0 : index
    %50 = vector.load %arg8[%c0_21, %c0_22] : memref<8x128xf32, #tpu.memory_space<vmem>>, vector<8x128xf32>
    tpu.vector_store %arg8[%c0_21, %c0_22], %30 {strides = array<i32>} : memref<8x128xf32, #tpu.memory_space<vmem>>, vector<8x128xf32>,
    return
  }
}

</mosaic_0001>

<llo_original>
// kernel: tpu_custom_call.1
$region0: #{tpu_custom_call.1}
  #allocation0 [shape = 'u32[]', space=smem, size = 0x4, offset = 0x4, fixed_abs, tag = 'smem constant byte address 0x4 - core index']
  #allocation1 [shape = 'u32[144,128]{1,0:T(1,128)}', space=vmem, size = 0x12000, scoped, tag = 'internal scratch']
  %s0 = inlined_call_operand.hbm [shape: f32[8,128], index: 0, kind: input, shape index: {}]
  %s1 = inlined_call_operand.vmem [shape: f32[1,128], index: 1, kind: input, shape index: {}]
  %s2 = inlined_call_operand.hbm [shape: f32[128,512], index: 2, kind: input, shape index: {}]
  %s3 = inlined_call_operand.vmem [shape: f32[1,512], index: 3, kind: input, shape index: {}]
  %s4 = inlined_call_operand.hbm [shape: f32[128,128], index: 4, kind: input, shape index: {}]
  %s5 = inlined_call_operand.vmem [shape: f32[1,128], index: 5, kind: input, shape index: {}]
  %s6 = inlined_call_operand.hbm [shape: f32[8,128], index: 6, kind: output, shape index: {0}]
  %s7 = inlined_call_operand.hbm [shape: f32[8,128], index: 7, kind: output, shape index: {1}]
  %s8 = inlined_call_operand.hbm [shape: f32[8,128], index: 8, kind: output, shape index: {2}]
  %9 = xla_tuple %s6, %s7, %s8
  %s10 = sld [smem:[#allocation0]]
  $region62: #{tpu_custom_call.1} parent=0
    _
  %s12 = ssub.s32 1, %s10
  %s13 = scalar_select 0, %s12, %s10
  $region1: #{tpu_custom_call.1} parent=0
    #allocation2 [shape = 'u8[4096]{0}', space=vmem, size = 0x1000, scoped, tag = 'input window, operand 0, single buffered']
    #allocation3 [shape = 's32[1]{0}', space=sflag, size = 0x4, scoped, tag = 'scoped memory for tpu_custom_call.1']
    #allocation4 [shape = 's32[1]{0}', space=sflag, size = 0x4, scoped, tag = 'scoped memory for tpu_custom_call.1']
    #allocation5 [shape = 'u8[262144]{0}', space=vmem, size = 0x40000, scoped, tag = 'input window, operand 2, single buffered']
    #allocation6 [shape = 's32[1]{0}', space=sflag, size = 0x4, scoped, tag = 'scoped memory for tpu_custom_call.1']
    #allocation7 [shape = 'u8[65536]{0}', space=vmem, size = 0x10000, scoped, tag = 'input window, operand 4, single buffered']
    #allocation8 [shape = 'u8[4096]{0}', space=vmem, size = 0x1000, scoped, tag = 'output window, operand 0, single buffered']
    #allocation9 [shape = 'u8[4096]{0}', space=vmem, size = 0x1000, scoped, tag = 'output window, operand 1, single buffered']
    #allocation10 [shape = 's32[1]{0}', space=sflag, size = 0x4, scoped, tag = 'scoped memory for tpu_custom_call.1']
    #allocation11 [shape = 'u8[4096]{0}', space=vmem, size = 0x1000, scoped, tag = 'output window, operand 2, single buffered']
    %14 = vsyncpa [#allocation3], 0
    %15 = vsyncpa [#allocation6], 0
    %16 = vsyncpa [#allocation4], 0
    %17 = vsyncpa [#allocation10], 0
    // Predicated region
    $region2: #{tpu_custom_call.1} parent=1 // pred_check
      _
    $region3: #{tpu_custom_call.1} parent=1 // pred_check_branch
      %19 = sbr.rel (0) target = $region5
    $region4: #{tpu_custom_call.1} parent=1 // pred_region
      %s21 = ssub.s32 128, 128
      %22 = vsyncadd [#allocation3], %s21
      %s24 = sshll.u32 [#allocation2], 4
      %s25 = int_to_ptr.vmem [resolvable:$true] %s24
      %27 = dma.hbm_to_vmem [thread:$0]  %s0, 128, %s25, [#allocation3]
    $region5: #{tpu_custom_call.1} parent=1 // pred_fallthru
      _
    // Predicated region
    $region6: #{tpu_custom_call.1} parent=1 // pred_check
      _
    $region7: #{tpu_custom_call.1} parent=1 // pred_check_branch
      %29 = sbr.rel (0) target = $region9
    $region8: #{tpu_custom_call.1} parent=1 // pred_region
      _
    $region9: #{tpu_custom_call.1} parent=1 // pred_fallthru
      _
    // Predicated region
    $region10: #{tpu_custom_call.1} parent=1 // pred_check
      _
    $region11: #{tpu_custom_call.1} parent=1 // pred_check_branch
      %31 = sbr.rel (0) target = $region13
    $region12: #{tpu_custom_call.1} parent=1 // pred_region
      %s33 = ssub.s32 8192, 8192
      %34 = vsyncadd [#allocation6], %s33
      %s35 = sshll.u32 [#allocation5], 4
      %s36 = int_to_ptr.vmem [resolvable:$true] %s35
      %41 = dma.hbm_to_vmem [thread:$0]  %s2, 8192, %s36, [#allocation6], 512, 512, 32
    $region13: #{tpu_custom_call.1} parent=1 // pred_fallthru
      _
    // Predicated region
    $region14: #{tpu_custom_call.1} parent=1 // pred_check
      _
    $region15: #{tpu_custom_call.1} parent=1 // pred_check_branch
      %43 = sbr.rel (0) target = $region17
    $region16: #{tpu_custom_call.1} parent=1 // pred_region
      _
    $region17: #{tpu_custom_call.1} parent=1 // pred_fallthru
      _
    // Predicated region
    $region18: #{tpu_custom_call.1} parent=1 // pred_check
      _
    $region19: #{tpu_custom_call.1} parent=1 // pred_check_branch
      %45 = sbr.rel (0) target = $region21
    $region20: #{tpu_custom_call.1} parent=1 // pred_region
      %s47 = ssub.s32 2048, 2048
      %48 = vsyncadd [#allocation6], %s47
      %s49 = sshll.u32 [#allocation7], 4
      %s50 = int_to_ptr.vmem [resolvable:$true] %s49
      %55 = dma.hbm_to_vmem [thread:$0]  %s4, 2048, %s50, [#allocation6], 128, 128, 8
    $region21: #{tpu_custom_call.1} parent=1 // pred_fallthru
      _
    // Predicated region
    $region22: #{tpu_custom_call.1} parent=1 // pred_check
      _
    $region23: #{tpu_custom_call.1} parent=1 // pred_check_branch
      %57 = sbr.rel (0) target = $region25
    $region24: #{tpu_custom_call.1} parent=1 // pred_region
      _
    $region25: #{tpu_custom_call.1} parent=1 // pred_fallthru
      _
    // Predicated region
    $region26: #{tpu_custom_call.1} parent=1 // pred_check
      _
    $region27: #{tpu_custom_call.1} parent=1 // pred_check_branch
      %59 = sbr.rel (0) target = $region29
    $region28: #{tpu_custom_call.1} parent=1 // pred_region
      %60 = dma.done [#allocation3], 128
    $region29: #{tpu_custom_call.1} parent=1 // pred_fallthru
      _
    // Predicated region
    $region30: #{tpu_custom_call.1} parent=1 // pred_check
      _
    $region31: #{tpu_custom_call.1} parent=1 // pred_check_branch
      %62 = sbr.rel (0) target = $region33
    $region32: #{tpu_custom_call.1} parent=1 // pred_region
      %63 = dma.done [#allocation6], 8192
    $region33: #{tpu_custom_call.1} parent=1 // pred_fallthru
      _
    // Predicated region
    $region34: #{tpu_custom_call.1} parent=1 // pred_check
      _
    $region35: #{tpu_custom_call.1} parent=1 // pred_check_branch
      %65 = sbr.rel (0) target = $region37
    $region36: #{tpu_custom_call.1} parent=1 // pred_region
      %66 = dma.done [#allocation6], 2048
    $region37: #{tpu_custom_call.1} parent=1 // pred_fallthru
      _
    %v67 = vld [vmem:[#allocation2] sm:$0xff]
    %v68 = vld [vmem:[%s1] sm:$0x1]
    %v69 = vld [vmem:[#allocation5] sm:$0xff]
    %v70 = vld [vmem:[#allocation5 + $0x8] sm:$0xff]
    %v71 = vld [vmem:[#allocation5 + $0x10] sm:$0xff]
    %v72 = vld [vmem:[#allocation5 + $0x18] sm:$0xff]
    %v73 = vld [vmem:[#allocation5 + $0x20] sm:$0xff]
    %v74 = vld [vmem:[#allocation5 + $0x28] sm:$0xff]
    %v75 = vld [vmem:[#allocation5 + $0x30] sm:$0xff]
    %v76 = vld [vmem:[#allocation5 + $0x38] sm:$0xff]
    %v77 = vld [vmem:[#allocation5 + $0x40] sm:$0xff]
    %v78 = vld [vmem:[#allocation5 + $0x48] sm:$0xff]
    %v79 = vld [vmem:[#allocation5 + $0x50] sm:$0xff]
    %v80 = vld [vmem:[#allocation5 + $0x58] sm:$0xff]
    %v81 = vld [vmem:[#allocation5 + $0x60] sm:$0xff]
    %v82 = vld [vmem:[#allocation5 + $0x68] sm:$0xff]
    %v83 = vld [vmem:[#allocation5 + $0x70] sm:$0xff]
    %v84 = vld [vmem:[#allocation5 + $0x78] sm:$0xff]
    %v85 = vld [vmem:[#allocation5 + $0x80] sm:$0xff]
    %v86 = vld [vmem:[#allocation5 + $0x88] sm:$0xff]
    %v87 = vld [vmem:[#allocation5 + $0x90] sm:$0xff]
    %v88 = vld [vmem:[#allocation5 + $0x98] sm:$0xff]
    %v89 = vld [vmem:[#allocation5 + $0xa0] sm:$0xff]
    %v90 = vld [vmem:[#allocation5 + $0xa8] sm:$0xff]
    %v91 = vld [vmem:[#allocation5 + $0xb0] sm:$0xff]
    %v92 = vld [vmem:[#allocation5 + $0xb8] sm:$0xff]
    %v93 = vld [vmem:[#allocation5 + $0xc0] sm:$0xff]
    %v94 = vld [vmem:[#allocation5 + $0xc8] sm:$0xff]
    %v95 = vld [vmem:[#allocation5 + $0xd0] sm:$0xff]
    %v96 = vld [vmem:[#allocation5 + $0xd8] sm:$0xff]
    %v97 = vld [vmem:[#allocation5 + $0xe0] sm:$0xff]
    %v98 = vld [vmem:[#allocation5 + $0xe8] sm:$0xff]
    %v99 = vld [vmem:[#allocation5 + $0xf0] sm:$0xff]
    %v100 = vld [vmem:[#allocation5 + $0xf8] sm:$0xff]
    %v101 = vld [vmem:[#allocation5 + $0x100] sm:$0xff]
    %v102 = vld [vmem:[#allocation5 + $0x108] sm:$0xff]
    %v103 = vld [vmem:[#allocation5 + $0x110] sm:$0xff]
    %v104 = vld [vmem:[#allocation5 + $0x118] sm:$0xff]
    %v105 = vld [vmem:[#allocation5 + $0x120] sm:$0xff]
    %v106 = vld [vmem:[#allocation5 + $0x128] sm:$0xff]
    %v107 = vld [vmem:[#allocation5 + $0x130] sm:$0xff]
    %v108 = vld [vmem:[#allocation5 + $0x138] sm:$0xff]
    %v109 = vld [vmem:[#allocation5 + $0x140] sm:$0xff]
    %v110 = vld [vmem:[#allocation5 + $0x148] sm:$0xff]
    %v111 = vld [vmem:[#allocation5 + $0x150] sm:$0xff]
    %v112 = vld [vmem:[#allocation5 + $0x158] sm:$0xff]
    %v113 = vld [vmem:[#allocation5 + $0x160] sm:$0xff]
    %v114 = vld [vmem:[#allocation5 + $0x168] sm:$0xff]
    %v115 = vld [vmem:[#allocation5 + $0x170] sm:$0xff]
    %v116 = vld [vmem:[#allocation5 + $0x178] sm:$0xff]
    %v117 = vld [vmem:[#allocation5 + $0x180] sm:$0xff]
    %v118 = vld [vmem:[#allocation5 + $0x188] sm:$0xff]
    %v119 = vld [vmem:[#allocation5 + $0x190] sm:$0xff]
    %v120 = vld [vmem:[#allocation5 + $0x198] sm:$0xff]
    %v121 = vld [vmem:[#allocation5 + $0x1a0] sm:$0xff]
    %v122 = vld [vmem:[#allocation5 + $0x1a8] sm:$0xff]
    %v123 = vld [vmem:[#allocation5 + $0x1b0] sm:$0xff]
    %v124 = vld [vmem:[#allocation5 + $0x1b8] sm:$0xff]
    %v125 = vld [vmem:[#allocation5 + $0x1c0] sm:$0xff]
    %v126 = vld [vmem:[#allocation5 + $0x1c8] sm:$0xff]
    %v127 = vld [vmem:[#allocation5 + $0x1d0] sm:$0xff]
    %v128 = vld [vmem:[#allocation5 + $0x1d8] sm:$0xff]
    %v129 = vld [vmem:[#allocation5 + $0x1e0] sm:$0xff]
    %v130 = vld [vmem:[#allocation5 + $0x1e8] sm:$0xff]
    %v131 = vld [vmem:[#allocation5 + $0x1f0] sm:$0xff]
    %v132 = vld [vmem:[#allocation5 + $0x1f8] sm:$0xff]
    %v133 = vld [vmem:[%s3] sm:$0xf]
    %v135 = vlaneseq
    %v136 = vshrl.u32 %v135, 7
    %v137 = vsub.s32 0, %v136
    %v138 = vrot.slane %v133, %v137
    %v139 = vlaneseq
    %v140 = vshrl.u32 %v139, 7
    %v141 = vsub.s32 1, %v140
    %v142 = vrot.slane %v133, %v141
    %v143 = vlaneseq
    %v144 = vshrl.u32 %v143, 7
    %v145 = vsub.s32 2, %v144
    %v146 = vrot.slane %v133, %v145
    %v147 = vlaneseq
    %v148 = vshrl.u32 %v147, 7
    %v149 = vsub.s32 3, %v148
    %v150 = vrot.slane %v133, %v149
    %155 = vmatprep.subr.mxu0 %v70
    %156 = vmatpush1.msra.mxu0 %v69
    %157 = vmatprep.subr.mxu0 %v74
    %158 = vmatpush1.msra.mxu0 %v73
    %159 = vmatprep.subr.mxu0 %v78
    %160 = vmatpush1.msra.mxu0 %v77
    %161 = vmatprep.subr.mxu0 %v82
    %162 = vmatpush1.msra.mxu0 %v81
    %163 = vmatprep.subr.mxu0 %v86
    %164 = vmatpush1.msra.mxu0 %v85
    %165 = vmatprep.subr.mxu0 %v90
    %166 = vmatpush1.msra.mxu0 %v89
    %167 = vmatprep.subr.mxu0 %v94
    %168 = vmatpush1.msra.mxu0 %v93
    %169 = vmatprep.subr.mxu0 %v98
    %170 = vmatpush1.msra.mxu0 %v97
    %171 = vmatprep.subr.mxu0 %v102
    %172 = vmatpush1.msra.mxu0 %v101
    %173 = vmatprep.subr.mxu0 %v106
    %174 = vmatpush1.msra.mxu0 %v105
    %175 = vmatprep.subr.mxu0 %v110
    %176 = vmatpush1.msra.mxu0 %v109
    %177 = vmatprep.subr.mxu0 %v114
    %178 = vmatpush1.msra.mxu0 %v113
    %179 = vmatprep.subr.mxu0 %v118
    %180 = vmatpush1.msra.mxu0 %v117
    %181 = vmatprep.subr.mxu0 %v122
    %182 = vmatpush1.msra.mxu0 %v121
    %183 = vmatprep.subr.mxu0 %v126
    %184 = vmatpush1.msra.mxu0 %v125
    %185 = vmatprep.subr.mxu0 %v130
    %186 = vmatpush1.msra.mxu0 %v129
    %187 = vmatprep.subr.mxu0 0.0
    %188 = vmatpush1.msra.mxu0 0.0
    %189 = vmatprep.subr.mxu0 0.0
    %190 = vmatpush1.msra.mxu0 0.0
    %191 = vmatprep.subr.mxu0 0.0
    %192 = vmatpush1.msra.mxu0 0.0
    %193 = vmatprep.subr.mxu0 0.0
    %194 = vmatpush1.msra.mxu0 0.0
    %195 = vmatprep.subr.mxu0 0.0
    %196 = vmatpush1.msra.mxu0 0.0
    %197 = vmatprep.subr.mxu0 0.0
    %198 = vmatpush1.msra.mxu0 0.0
    %199 = vmatprep.subr.mxu0 0.0
    %200 = vmatpush1.msra.mxu0 0.0
    %201 = vmatprep.subr.mxu0 0.0
    %202 = vmatpush1.msra.mxu0 0.0
    %203 = vmatprep.subr.mxu0 0.0
    %204 = vmatpush1.msra.mxu0 0.0
    %205 = vmatprep.subr.mxu0 0.0
    %206 = vmatpush1.msra.mxu0 0.0
    %207 = vmatprep.subr.mxu0 0.0
    %208 = vmatpush1.msra.mxu0 0.0
    %209 = vmatprep.subr.mxu0 0.0
    %210 = vmatpush1.msra.mxu0 0.0
    %211 = vmatprep.subr.mxu0 0.0
    %212 = vmatpush1.msra.mxu0 0.0
    %213 = vmatprep.subr.mxu0 0.0
    %214 = vmatpush1.msra.mxu0 0.0
    %215 = vmatprep.subr.mxu0 0.0
    %216 = vmatpush1.msra.mxu0 0.0
    %217 = vmatprep.subr.mxu0 0.0
    %218 = vmatpush1.msra.mxu0 0.0
    %219 = vmatprep.mubr.f32.mxu0 0.0
    %220 = vmatmul.mubr.f32.gmra.mrb[0].mxu0 %v67
    %v221 = vpop.f32.mrb[0].mxu0
    %v222 = vadd.f32 %v138, %v221
    %v223 = vpop.f32.mrb[0].mxu0
    %v224 = vadd.f32 %v142, %v223
    %225 = vdwg.mxu0
    %226 = vmatprep.subr.mxu0 %v72
    %227 = vmatpush1.msra.mxu0 %v71
    %228 = vmatprep.subr.mxu0 %v76
    %229 = vmatpush1.msra.mxu0 %v75
    %230 = vmatprep.subr.mxu0 %v80
    %231 = vmatpush1.msra.mxu0 %v79
    %232 = vmatprep.subr.mxu0 %v84
    %233 = vmatpush1.msra.mxu0 %v83
    %234 = vmatprep.subr.mxu0 %v88
    %235 = vmatpush1.msra.mxu0 %v87
    %236 = vmatprep.subr.mxu0 %v92
    %237 = vmatpush1.msra.mxu0 %v91
    %238 = vmatprep.subr.mxu0 %v96
    %239 = vmatpush1.msra.mxu0 %v95
    %240 = vmatprep.subr.mxu0 %v100
    %241 = vmatpush1.msra.mxu0 %v99
    %242 = vmatprep.subr.mxu0 %v104
    %243 = vmatpush1.msra.mxu0 %v103
    %244 = vmatprep.subr.mxu0 %v108
    %245 = vmatpush1.msra.mxu0 %v107
    %246 = vmatprep.subr.mxu0 %v112
    %247 = vmatpush1.msra.mxu0 %v111
    %248 = vmatprep.subr.mxu0 %v116
    %249 = vmatpush1.msra.mxu0 %v115
    %250 = vmatprep.subr.mxu0 %v120
    %251 = vmatpush1.msra.mxu0 %v119
    %252 = vmatprep.subr.mxu0 %v124
    %253 = vmatpush1.msra.mxu0 %v123
    %254 = vmatprep.subr.mxu0 %v128
    %255 = vmatpush1.msra.mxu0 %v127
    %256 = vmatprep.subr.mxu0 %v132
    %257 = vmatpush1.msra.mxu0 %v131
    %258 = vmatprep.subr.mxu0 0.0
    %259 = vmatpush1.msra.mxu0 0.0
    %260 = vmatprep.subr.mxu0 0.0
    %261 = vmatpush1.msra.mxu0 0.0
    %262 = vmatprep.subr.mxu0 0.0
    %263 = vmatpush1.msra.mxu0 0.0
    %264 = vmatprep.subr.mxu0 0.0
    %265 = vmatpush1.msra.mxu0 0.0
    %266 = vmatprep.subr.mxu0 0.0
    %267 = vmatpush1.msra.mxu0 0.0
    %268 = vmatprep.subr.mxu0 0.0
    %269 = vmatpush1.msra.mxu0 0.0
    %270 = vmatprep.subr.mxu0 0.0
    %271 = vmatpush1.msra.mxu0 0.0
    %272 = vmatprep.subr.mxu0 0.0
    %273 = vmatpush1.msra.mxu0 0.0
    %274 = vmatprep.subr.mxu0 0.0
    %275 = vmatpush1.msra.mxu0 0.0
    %276 = vmatprep.subr.mxu0 0.0
    %277 = vmatpush1.msra.mxu0 0.0
    %278 = vmatprep.subr.mxu0 0.0
    %279 = vmatpush1.msra.mxu0 0.0
    %280 = vmatprep.subr.mxu0 0.0
    %281 = vmatpush1.msra.mxu0 0.0
    %282 = vmatprep.subr.mxu0 0.0
    %283 = vmatpush1.msra.mxu0 0.0
    %284 = vmatprep.subr.mxu0 0.0
    %285 = vmatpush1.msra.mxu0 0.0
    %286 = vmatprep.subr.mxu0 0.0
    %287 = vmatpush1.msra.mxu0 0.0
    %288 = vmatprep.subr.mxu0 0.0
    %289 = vmatpush1.msra.mxu0 0.0
    %290 = vmatprep.mubr.f32.mxu0 0.0
    %291 = vmatmul.mubr.f32.gmra.mrb[0].mxu0 %v67
    %v292 = vpop.f32.mrb[0].mxu0
    %v293 = vadd.f32 %v146, %v292
    %v294 = vpop.f32.mrb[0].mxu0
    %v295 = vadd.f32 %v150, %v294
    %296 = vdwg.mxu0
    %v297 = vxor.u32 %v222, 2147483648
    %v298 = vmul.f32 %v297, 1.442695
    %v299 = vpow.pop %v298
    %v300 = vadd.f32 %v299, 1.0
    %v301 = vrcp.pop %v300
    %v302 = vmul.f32 1.0, %v301
    %v303 = vxor.u32 %v224, 2147483648
    %v304 = vmul.f32 %v303, 1.442695
    %v305 = vpow.pop %v304
    %v306 = vadd.f32 %v305, 1.0
    %v307 = vrcp.pop %v306
    %v308 = vmul.f32 1.0, %v307
    %v309 = vtanh.pop %v293
    %v310 = vxor.u32 %v295, 2147483648
    %v311 = vmul.f32 %v310, 1.442695
    %v312 = vpow.pop %v311
    %v313 = vadd.f32 %v312, 1.0
    %v314 = vrcp.pop %v313
    %v315 = vmul.f32 1.0, %v314
    %v317 = vlaneseq
    %v318 = vshrl.u32 %v317, 7
    %v319 = vsub.s32 0, %v318
    %v320 = vrot.slane %v68, %v319
    %v322 = vmul.f32 %v302, %v320
    %v323 = vmul.f32 %v308, %v309
    %v324 = vadd.f32 %v322, %v323
    %v325 = vtanh.pop %v324
    %v326 = vmul.f32 %v315, %v325
    %v327 = vld [vmem:[#allocation7] sm:$0xff]
    %v328 = vld [vmem:[#allocation7 + $0x8] sm:$0xff]
    %v329 = vld [vmem:[#allocation7 + $0x10] sm:$0xff]
    %v330 = vld [vmem:[#allocation7 + $0x18] sm:$0xff]
    %v331 = vld [vmem:[#allocation7 + $0x20] sm:$0xff]
    %v332 = vld [vmem:[#allocation7 + $0x28] sm:$0xff]
    %v333 = vld [vmem:[#allocation7 + $0x30] sm:$0xff]
    %v334 = vld [vmem:[#allocation7 + $0x38] sm:$0xff]
    %v335 = vld [vmem:[#allocation7 + $0x40] sm:$0xff]
    %v336 = vld [vmem:[#allocation7 + $0x48] sm:$0xff]
    %v337 = vld [vmem:[#allocation7 + $0x50] sm:$0xff]
    %v338 = vld [vmem:[#allocation7 + $0x58] sm:$0xff]
    %v339 = vld [vmem:[#allocation7 + $0x60] sm:$0xff]
    %v340 = vld [vmem:[#allocation7 + $0x68] sm:$0xff]
    %v341 = vld [vmem:[#allocation7 + $0x70] sm:$0xff]
    %v342 = vld [vmem:[#allocation7 + $0x78] sm:$0xff]
    %v343 = vld [vmem:[%s5] sm:$0x1]
    %v345 = vlaneseq
    %v346 = vshrl.u32 %v345, 7
    %v347 = vsub.s32 0, %v346
    %v348 = vrot.slane %v343, %v347
    %350 = vmatprep.subr.mxu0 0.0
    %351 = vmatpush1.msra.mxu0 %v327
    %352 = vmatprep.subr.mxu0 0.0
    %353 = vmatpush1.msra.mxu0 %v328
    %354 = vmatprep.subr.mxu0 0.0
    %355 = vmatpush1.msra.mxu0 %v329
    %356 = vmatprep.subr.mxu0 0.0
    %357 = vmatpush1.msra.mxu0 %v330
    %358 = vmatprep.subr.mxu0 0.0
    %359 = vmatpush1.msra.mxu0 %v331
    %360 = vmatprep.subr.mxu0 0.0
    %361 = vmatpush1.msra.mxu0 %v332
    %362 = vmatprep.subr.mxu0 0.0
    %363 = vmatpush1.msra.mxu0 %v333
    %364 = vmatprep.subr.mxu0 0.0
    %365 = vmatpush1.msra.mxu0 %v334
    %366 = vmatprep.subr.mxu0 0.0
    %367 = vmatpush1.msra.mxu0 %v335
    %368 = vmatprep.subr.mxu0 0.0
    %369 = vmatpush1.msra.mxu0 %v336
    %370 = vmatprep.subr.mxu0 0.0
    %371 = vmatpush1.msra.mxu0 %v337
    %372 = vmatprep.subr.mxu0 0.0
    %373 = vmatpush1.msra.mxu0 %v338
    %374 = vmatprep.subr.mxu0 0.0
    %375 = vmatpush1.msra.mxu0 %v339
    %376 = vmatprep.subr.mxu0 0.0
    %377 = vmatpush1.msra.mxu0 %v340
    %378 = vmatprep.subr.mxu0 0.0
    %379 = vmatpush1.msra.mxu0 %v341
    %380 = vmatprep.subr.mxu0 0.0
    %381 = vmatpush1.msra.mxu0 %v342
    %382 = vmatprep.subr.mxu0 0.0
    %383 = vmatpush1.msra.mxu0 0.0
    %384 = vmatprep.subr.mxu0 0.0
    %385 = vmatpush1.msra.mxu0 0.0
    %386 = vmatprep.subr.mxu0 0.0
    %387 = vmatpush1.msra.mxu0 0.0
    %388 = vmatprep.subr.mxu0 0.0
    %389 = vmatpush1.msra.mxu0 0.0
    %390 = vmatprep.subr.mxu0 0.0
    %391 = vmatpush1.msra.mxu0 0.0
    %392 = vmatprep.subr.mxu0 0.0
    %393 = vmatpush1.msra.mxu0 0.0
    %394 = vmatprep.subr.mxu0 0.0
    %395 = vmatpush1.msra.mxu0 0.0
    %396 = vmatprep.subr.mxu0 0.0
    %397 = vmatpush1.msra.mxu0 0.0
    %398 = vmatprep.subr.mxu0 0.0
    %399 = vmatpush1.msra.mxu0 0.0
    %400 = vmatprep.subr.mxu0 0.0
    %401 = vmatpush1.msra.mxu0 0.0
    %402 = vmatprep.subr.mxu0 0.0
    %403 = vmatpush1.msra.mxu0 0.0
    %404 = vmatprep.subr.mxu0 0.0
    %405 = vmatpush1.msra.mxu0 0.0
    %406 = vmatprep.subr.mxu0 0.0
    %407 = vmatpush1.msra.mxu0 0.0
    %408 = vmatprep.subr.mxu0 0.0
    %409 = vmatpush1.msra.mxu0 0.0
    %410 = vmatprep.subr.mxu0 0.0
    %411 = vmatpush1.msra.mxu0 0.0
    %412 = vmatprep.subr.mxu0 0.0
    %413 = vmatpush1.msra.mxu0 0.0
    %414 = vmatprep.mubr.f32.mxu0 0.0
    %415 = vmatmul.mubr.f32.gmra.mrb[0].mxu0 %v326
    %v416 = vpop.f32.mrb[0].mxu0
    %v417 = vadd.f32 %v348, %v416
    %v418 = vpop.f32.mrb[0].mxu0
    %419 = vdwg.mxu0
    %420 = vmax.xlane.f32.xlu0 %v417
    %v421 = vpop.xlane.xlu0 %420
    %v422 = vsub.f32 %v417, %v421
    %v423 = vmul.f32 %v422, 1.442695
    %v424 = vpow.pop %v423
    %425 = vadd.xlane.f32.xlu0 %v424
    %v426 = vpop.xlane.xlu0 %425
    %v427 = vrcp.pop %v426
    %v428 = vmul.f32 %v424, %v427
    %429 = vst [vmem:[#allocation8] sm:$0xff] %v428
    %430 = vst [vmem:[#allocation9] sm:$0xff] %v326
    %431 = vst [vmem:[#allocation11] sm:$0xff] %v324
    // Predicated region
    $region38: #{tpu_custom_call.1} parent=1 // pred_check
      _
    $region39: #{tpu_custom_call.1} parent=1 // pred_check_branch
      %433 = sbr.rel (0) target = $region41
    $region40: #{tpu_custom_call.1} parent=1 // pred_region
      %s435 = ssub.s32 128, 128
      %436 = vsyncadd [#allocation4], %s435
      %s438 = sshll.u32 [#allocation8], 4
      %s439 = int_to_ptr.vmem [resolvable:$true] %s438
      %441 = dma.vmem_to_hbm [thread:$0]  %s439, 128, %s6, [#allocation4]
    $region41: #{tpu_custom_call.1} parent=1 // pred_fallthru
      _
    // Predicated region
    $region42: #{tpu_custom_call.1} parent=1 // pred_check
      _
    $region43: #{tpu_custom_call.1} parent=1 // pred_check_branch
      %443 = sbr.rel (0) target = $region45
    $region44: #{tpu_custom_call.1} parent=1 // pred_region
      %s445 = ssub.s32 128, 128
      %446 = vsyncadd [#allocation10], %s445
      %s448 = sshll.u32 [#allocation9], 4
      %s449 = int_to_ptr.vmem [resolvable:$true] %s448
      %451 = dma.vmem_to_hbm [thread:$0]  %s449, 128, %s7, [#allocation10]
    $region45: #{tpu_custom_call.1} parent=1 // pred_fallthru
      _
    // Predicated region
    $region46: #{tpu_custom_call.1} parent=1 // pred_check
      _
    $region47: #{tpu_custom_call.1} parent=1 // pred_check_branch
      %453 = sbr.rel (0) target = $region49
    $region48: #{tpu_custom_call.1} parent=1 // pred_region
      %s455 = ssub.s32 128, 128
      %456 = vsyncadd [#allocation10], %s455
      %s458 = sshll.u32 [#allocation11], 4
      %s459 = int_to_ptr.vmem [resolvable:$true] %s458
      %461 = dma.vmem_to_hbm [thread:$0]  %s459, 128, %s8, [#allocation10]
    $region49: #{tpu_custom_call.1} parent=1 // pred_fallthru
      _
    // Predicated region
    $region50: #{tpu_custom_call.1} parent=1 // pred_check
      _
    $region51: #{tpu_custom_call.1} parent=1 // pred_check_branch
      %463 = sbr.rel (0) target = $region53
    $region52: #{tpu_custom_call.1} parent=1 // pred_region
      %464 = dma.done [#allocation4], 128
    $region53: #{tpu_custom_call.1} parent=1 // pred_fallthru
      _
    // Predicated region
    $region54: #{tpu_custom_call.1} parent=1 // pred_check
      _
    $region55: #{tpu_custom_call.1} parent=1 // pred_check_branch
      %466 = sbr.rel (0) target = $region57
    $region56: #{tpu_custom_call.1} parent=1 // pred_region
      %467 = dma.done [#allocation10], 128
    $region57: #{tpu_custom_call.1} parent=1 // pred_fallthru
      _
    // Predicated region
    $region58: #{tpu_custom_call.1} parent=1 // pred_check
      _
    $region59: #{tpu_custom_call.1} parent=1 // pred_check_branch
      %469 = sbr.rel (0) target = $region61
    $region60: #{tpu_custom_call.1} parent=1 // pred_region
      %470 = dma.done [#allocation10], 128
    $region61: #{tpu_custom_call.1} parent=1 // pred_fallthru
      _
    %471 = vsyncpa [#allocation3], 1
    %472 = vsyncpa [#allocation6], 1
    %473 = vsyncpa [#allocation4], 1
    %474 = vsyncpa [#allocation10], 1

</llo_original>
